<compile_context>
chip_gen: v7x
topology: tpu7x:2x2x1
jax: 0.10.0
libtpu: 0.0.40
codegen_flags: <defaults>
</compile_context>

<pallas_src>
import functools

import jax
import jax.numpy as jnp
from jax.experimental import pallas as pl
from jax.experimental.pallas import tpu as pltpu


def _rdrff_kernel(x_ref, wrff_ref, wcos_sg_ref, wsin_sg_ref, wcos_mu_ref,
                  wsin_mu_ref, bsg_ref, bmu_ref, sigma_ref, mu_ref):
    """Fused RFF featurization + sigma/mu heads for one batch tile.

    x_ref       : (tb, D)        input tile
    wrff_ref    : (D, F//2)      RFF frequency matrix (resident)
    wcos_sg_ref : (F//2, O)      cos-half of sigma head weight (scale folded)
    wsin_sg_ref : (F//2, O)      sin-half of sigma head weight
    wcos_mu_ref : (F//2, G*O)    cos-half of mu head weight
    wsin_mu_ref : (F//2, G*O)    sin-half of mu head weight
    bsg_ref     : (1, O)         sigma bias
    bmu_ref     : (1, G*O)       mu bias
    sigma_ref   : (tb, O)        output: exp(sigma-head)
    mu_ref      : (tb, G*O)      output: mu-head (flat)
    """
    x = x_ref[...]

    # --- Random Fourier Features: one tiny-K matmul + cos/sin on the EUP ---
    basis = jnp.dot(x, wrff_ref[...], preferred_element_type=jnp.float32)  # (tb, F//2)
    c = jnp.cos(basis)
    s = jnp.sin(basis)

    # Head dots run in the head-weight dtype (f32 or bf16), accumulate in f32.
    hd = wcos_mu_ref.dtype
    c_h = c.astype(hd)
    s_h = s.astype(hd)

    # --- sigma head: two K=128 dots, exact-width output, exp applied here ---
    lin_sg = (jnp.dot(c_h, wcos_sg_ref[...], preferred_element_type=jnp.float32)
              + jnp.dot(s_h, wsin_sg_ref[...], preferred_element_type=jnp.float32)
              + bsg_ref[...])
    sigma_ref[...] = jnp.exp(lin_sg)

    # --- mu head: two K=128 dots, exact-width output ---
    mu_ref[...] = (jnp.dot(c_h, wcos_mu_ref[...], preferred_element_type=jnp.float32)
                   + jnp.dot(s_h, wsin_mu_ref[...], preferred_element_type=jnp.float32)
                   + bmu_ref[...])


def prepare_rdrff_params(w_rff, w_sigma, b_sigma, w_mu, b_mu, *, nfeat,
                         compute_dtype=jnp.float32):
    """One-time weight prep (call at init, NOT per forward call).

    Folds the sqrt(1/F) RFF scale into the head weights, transposes them to
    (F, out) layout, and splits each into its cos half (rows [:F//2]) and sin
    half (rows [F//2:]) so the kernel never materializes the [cos|sin] concat.
    """
    F = nfeat
    Fh = F // 2
    scale = jnp.float32(1.0) / jnp.sqrt(jnp.float32(F))

    ws = jnp.asarray(w_sigma, jnp.float32).T * scale    # (F, O)
    wm = jnp.asarray(w_mu, jnp.float32).T * scale       # (F, G*O)

    return dict(
        w_rff=jnp.asarray(w_rff, jnp.float32),                       # (D, F//2)
        w_cos_sg=ws[:Fh].astype(compute_dtype),                      # (F//2, O)
        w_sin_sg=ws[Fh:].astype(compute_dtype),                      # (F//2, O)
        w_cos_mu=wm[:Fh].astype(compute_dtype),                      # (F//2, G*O)
        w_sin_mu=wm[Fh:].astype(compute_dtype),                      # (F//2, G*O)
        b_sg=jnp.asarray(b_sigma, jnp.float32).reshape(1, -1),       # (1, O)
        b_mu=jnp.asarray(b_mu, jnp.float32).reshape(1, -1),          # (1, G*O)
    )


def rdrff_forward_prepared(x, params, *, n_gaussians, n_outputs,
                           tile_b=1024, min_grid_steps=2):
    """Tiles over the batch dimension; all weights stay VMEM-resident."""
    N, D = x.shape
    O = n_outputs
    GO = n_gaussians * n_outputs
    Fh = params["w_rff"].shape[1]

    # --- batch tiling --------------------------------------------------------
    # tile_b: multiple of 8 (block-shape rule), no larger than the batch, and
    # small enough that the grid has >= min_grid_steps steps so both v7x
    # TensorCores get work under dimension_semantics=("parallel",).
    tile_b = max(8, min(tile_b, N))
    if min_grid_steps > 1:
        tile_b = min(tile_b, max(8, pl.cdiv(N, min_grid_steps)))
    tile_b = pl.cdiv(tile_b, 8) * 8
    N_pad = pl.cdiv(N, tile_b) * tile_b
    x_p = x if N_pad == N else jnp.pad(x, ((0, N_pad - N), (0, 0)))
    grid = (N_pad // tile_b,)

    resident = lambda shape: pl.BlockSpec(shape, lambda i: (0, 0))

    sigma, mu_flat = pl.pallas_call(
        _rdrff_kernel,
        out_shape=(jax.ShapeDtypeStruct((N_pad, O), jnp.float32),
                   jax.ShapeDtypeStruct((N_pad, GO), jnp.float32)),
        grid_spec=pltpu.PrefetchScalarGridSpec(
            num_scalar_prefetch=0,
            grid=grid,
            in_specs=[
                pl.BlockSpec((tile_b, D), lambda i: (i, 0)),   # x tile
                resident((D, Fh)),                             # w_rff
                resident((Fh, O)),                             # cos-half sigma W
                resident((Fh, O)),                             # sin-half sigma W
                resident((Fh, GO)),                            # cos-half mu W
                resident((Fh, GO)),                            # sin-half mu W
                resident((1, O)),                              # sigma bias
                resident((1, GO)),                             # mu bias
            ],
            out_specs=[
                pl.BlockSpec((tile_b, O), lambda i: (i, 0)),   # sigma (exact width)
                pl.BlockSpec((tile_b, GO), lambda i: (i, 0)),  # mu flat (exact width)
            ],
        ),
        compiler_params=pltpu.CompilerParams(
            dimension_semantics=("parallel",)),
    )(x_p, params["w_rff"],
      params["w_cos_sg"], params["w_sin_sg"],
      params["w_cos_mu"], params["w_sin_mu"],
      params["b_sg"], params["b_mu"])

    sigma = sigma[:N]
    # torch: Linear gives (N, G*O), then .reshape(-1, n_outputs, n_gaussians)
    mu = mu_flat[:N].reshape(N, n_outputs, n_gaussians)
    return sigma, mu


def rdrff_forward(x, w_rff, w_sigma, b_sigma, w_mu, b_mu, *, n_gaussians,
                  n_outputs, nfeat, tile_b=1024, min_grid_steps=2,
                  compute_dtype=jnp.float32):
    """Convenience wrapper. For production, call prepare_rdrff_params once at
    init and rdrff_forward_prepared per forward call."""
    params = prepare_rdrff_params(
        w_rff, w_sigma, b_sigma, w_mu, b_mu, nfeat=nfeat,
        compute_dtype=compute_dtype)
    return rdrff_forward_prepared(
        x, params, n_gaussians=n_gaussians, n_outputs=n_outputs,
        tile_b=tile_b, min_grid_steps=min_grid_steps)


def rdrff_reference(x, w_rff, w_sigma, b_sigma, w_mu, b_mu,
                    *, n_gaussians, n_outputs, nfeat):
    """Pure-JAX reference mirroring the torch forward (eval-mode dropout)."""
    basis = x @ w_rff
    z = jnp.sqrt(1.0 / nfeat) * jnp.concatenate(
        [jnp.cos(basis), jnp.sin(basis)], axis=1)
    sigma = jnp.exp(z @ w_sigma.T + b_sigma)
    mu = (z @ w_mu.T + b_mu).reshape(-1, n_outputs, n_gaussians)
    return sigma, mu


if __name__ == "__main__":
    # Small, deterministic config consistent with RDRFF(__init__):
    #   ncomp (n_gaussians)=8, nfeat=256, inputd=4, outputd=2, cosOnly=False.
    N, D = 16, 4
    NFEAT = 256
    NCOMP = 8
    OUTD = 2
    RFF_SIGMA = 1.0

    key = jax.random.PRNGKey(0)
    kx, kw, kws, kbs, kwm, kbm = jax.random.split(key, 6)

    x = jax.random.normal(kx, (N, D), dtype=jnp.float32)

    # RFF frequencies ~ N(0, 1/sigma^2); (D, NFEAT//2) so cos/sin concat gives NFEAT.
    w_rff = jax.random.normal(kw, (D, NFEAT // 2), dtype=jnp.float32) / RFF_SIGMA

    # torch.nn.Linear-style deterministic init: U(-1/sqrt(fan_in), 1/sqrt(fan_in)).
    bound = 1.0 / jnp.sqrt(jnp.float32(NFEAT))
    w_sigma = jax.random.uniform(kws, (OUTD, NFEAT), jnp.float32, -bound, bound)
    b_sigma = jax.random.uniform(kbs, (OUTD,), jnp.float32, -bound, bound)
    w_mu = jax.random.uniform(kwm, (NCOMP * OUTD, NFEAT), jnp.float32, -bound, bound)
    b_mu = jax.random.uniform(kbm, (NCOMP * OUTD,), jnp.float32, -bound, bound)

    sigma_ref, mu_ref = rdrff_reference(
        x, w_rff, w_sigma, b_sigma, w_mu, b_mu,
        n_gaussians=NCOMP, n_outputs=OUTD, nfeat=NFEAT)

    # --- f32 path (default; exact on all generations) -----------------------
    sigma, mu = rdrff_forward(
        x, w_rff, w_sigma, b_sigma, w_mu, b_mu,
        n_gaussians=NCOMP, n_outputs=OUTD, nfeat=NFEAT,
        tile_b=1024, min_grid_steps=2, compute_dtype=jnp.float32)
    jax.block_until_ready((sigma, mu))

    assert sigma.shape == (N, OUTD)
    assert mu.shape == (N, OUTD, NCOMP)
    assert jnp.allclose(sigma, sigma_ref, rtol=1e-5, atol=1e-5)
    assert jnp.allclose(mu, mu_ref, rtol=1e-5, atol=1e-5)

    # --- bf16 head-dot path (perf option for v6e/v7x; looser tolerance) -----
    sigma_bf, mu_bf = rdrff_forward(
        x, w_rff, w_sigma, b_sigma, w_mu, b_mu,
        n_gaussians=NCOMP, n_outputs=OUTD, nfeat=NFEAT,
        tile_b=1024, min_grid_steps=2, compute_dtype=jnp.bfloat16)
    jax.block_until_ready((sigma_bf, mu_bf))

    assert sigma_bf.shape == (N, OUTD)
    assert mu_bf.shape == (N, OUTD, NCOMP)
    assert jnp.allclose(sigma_bf, sigma_ref, rtol=5e-2, atol=5e-2)
    assert jnp.allclose(mu_bf, mu_ref, rtol=5e-2, atol=5e-2)

    print("KERNEL_OK")
</pallas_src>

<mosaic_0001>
module attributes {stable_mosaic.version = 11 : i64} {
  func.func @_rdrff_kernel(%arg0: i32, %arg1: memref<8x4xf32, #tpu.memory_space<vmem>>, %arg2: memref<4x128xf32, #tpu.memory_space<vmem>>, %arg3: memref<128x2xf32, #tpu.memory_space<vmem>>, %arg4: memref<128x2xf32, #tpu.memory_space<vmem>>, %arg5: memref<128x16xf32, #tpu.memory_space<vmem>>, %arg6: memref<128x16xf32, #tpu.memory_space<vmem>>, %arg7: memref<1x2xf32, #tpu.memory_space<vmem>>, %arg8: memref<1x16xf32, #tpu.memory_space<vmem>>, %arg9: memref<8x2xf32, #tpu.memory_space<vmem>>, %arg10: memref<8x16xf32, #tpu.memory_space<vmem>>) attributes {dimension_semantics = [#tpu.dimension_semantics<parallel>], iteration_bounds = array<i64: 2>, scalar_prefetch = 0 : i64, scratch_operands = 0 : i64, tpu.core_type = #tpu.core_type<tc>, window_params = [{transform_indices = @transform_0, window_bounds = array<i64: 8, 4>}, {pipeline_mode = #tpu.pipeline_mode<synchronous>, transform_indices = @transform_1, window_bounds = array<i64: 4, 128>}, {pipeline_mode = #tpu.pipeline_mode<synchronous>, transform_indices = @transform_2, window_bounds = array<i64: 128, 2>}, {pipeline_mode = #tpu.pipeline_mode<synchronous>, transform_indices = @transform_3, window_bounds = array<i64: 128, 2>}, {pipeline_mode = #tpu.pipeline_mode<synchronous>, transform_indices = @transform_4, window_bounds = array<i64: 128, 16>}, {pipeline_mode = #tpu.pipeline_mode<synchronous>, transform_indices = @transform_5, window_bounds = array<i64: 128, 16>}, {pipeline_mode = #tpu.pipeline_mode<synchronous>, transform_indices = @transform_6, window_bounds = array<i64: 1, 2>}, {pipeline_mode = #tpu.pipeline_mode<synchronous>, transform_indices = @transform_7, window_bounds = array<i64: 1, 16>}, {transform_indices = @transform_8, window_bounds = array<i64: 8, 2>}, {transform_indices = @transform_9, window_bounds = array<i64: 8, 16>}]} {
    %c0 = arith.constant 0 : index
    %c0_0 = arith.constant 0 : index
    %0 = vector.load %arg1[%c0, %c0_0] : memref<8x4xf32, #tpu.memory_space<vmem>>, vector<8x4xf32>
    %c0_1 = arith.constant 0 : index
    %c0_2 = arith.constant 0 : index
    %1 = vector.load %arg2[%c0_1, %c0_2] : memref<4x128xf32, #tpu.memory_space<vmem>>, vector<4x128xf32>
    %cst = arith.constant dense<0.000000e+00> : vector<8x128xf32>
    %2 = tpu.matmul %0, %1, %cst {dimension_numbers = #tpu.dot_dimension_numbers<[1], [0], [0], [1], [0, 0, 1, 1], [], []>} : vector<8x4xf32>, vector<4x128xf32>, vector<8x128xf32> -> vector<8x128xf32>
    %3 = math.cos %2 : vector<8x128xf32>
    %4 = math.sin %2 : vector<8x128xf32>
    %c0_3 = arith.constant 0 : index
    %c0_4 = arith.constant 0 : index
    %5 = vector.load %arg3[%c0_3, %c0_4] : memref<128x2xf32, #tpu.memory_space<vmem>>, vector<128x2xf32>
    %cst_5 = arith.constant dense<0.000000e+00> : vector<8x2xf32>
    %6 = tpu.matmul %3, %5, %cst_5 {dimension_numbers = #tpu.dot_dimension_numbers<[1], [0], [0], [1], [0, 0, 1, 1], [], []>} : vector<8x128xf32>, vector<128x2xf32>, vector<8x2xf32> -> vector<8x2xf32>
    %c0_6 = arith.constant 0 : index
    %c0_7 = arith.constant 0 : index
    %7 = vector.load %arg4[%c0_6, %c0_7] : memref<128x2xf32, #tpu.memory_space<vmem>>, vector<128x2xf32>
    %cst_8 = arith.constant dense<0.000000e+00> : vector<8x2xf32>
    %8 = tpu.matmul %4, %7, %cst_8 {dimension_numbers = #tpu.dot_dimension_numbers<[1], [0], [0], [1], [0, 0, 1, 1], [], []>} : vector<8x128xf32>, vector<128x2xf32>, vector<8x2xf32> -> vector<8x2xf32>
    %9 = arith.addf %6, %8 : vector<8x2xf32>
    %c0_9 = arith.constant 0 : index
    %c0_10 = arith.constant 0 : index
    %10 = vector.load %arg7[%c0_9, %c0_10] : memref<1x2xf32, #tpu.memory_space<vmem>>, vector<1x2xf32>
    %11 = vector.broadcast %10 : vector<1x2xf32> to vector<8x2xf32>
    %12 = arith.addf %9, %11 : vector<8x2xf32>
    %13 = math.exp %12 : vector<8x2xf32>
    %c0_11 = arith.constant 0 : index
    %c0_12 = arith.constant 0 : index
    %14 = vector.load %arg9[%c0_11, %c0_12] : memref<8x2xf32, #tpu.memory_space<vmem>>, vector<8x2xf32>
    tpu.vector_store %arg9[%c0_11, %c0_12], %13 {strides = array<i32>} : memref<8x2xf32, #tpu.memory_space<vmem>>, vector<8x2xf32>,
    %c0_13 = arith.constant 0 : index
    %c0_14 = arith.constant 0 : index
    %15 = vector.load %arg5[%c0_13, %c0_14] : memref<128x16xf32, #tpu.memory_space<vmem>>, vector<128x16xf32>
    %cst_15 = arith.constant dense<0.000000e+00> : vector<8x16xf32>
    %16 = tpu.matmul %3, %15, %cst_15 {dimension_numbers = #tpu.dot_dimension_numbers<[1], [0], [0], [1], [0, 0, 1, 1], [], []>} : vector<8x128xf32>, vector<128x16xf32>, vector<8x16xf32> -> vector<8x16xf32>
    %c0_16 = arith.constant 0 : index
    %c0_17 = arith.constant 0 : index
    %17 = vector.load %arg6[%c0_16, %c0_17] : memref<128x16xf32, #tpu.memory_space<vmem>>, vector<128x16xf32>
    %cst_18 = arith.constant dense<0.000000e+00> : vector<8x16xf32>
    %18 = tpu.matmul %4, %17, %cst_18 {dimension_numbers = #tpu.dot_dimension_numbers<[1], [0], [0], [1], [0, 0, 1, 1], [], []>} : vector<8x128xf32>, vector<128x16xf32>, vector<8x16xf32> -> vector<8x16xf32>
    %19 = arith.addf %16, %18 : vector<8x16xf32>
    %c0_19 = arith.constant 0 : index
    %c0_20 = arith.constant 0 : index
    %20 = vector.load %arg8[%c0_19, %c0_20] : memref<1x16xf32, #tpu.memory_space<vmem>>, vector<1x16xf32>
    %21 = vector.broadcast %20 : vector<1x16xf32> to vector<8x16xf32>
    %22 = arith.addf %19, %21 : vector<8x16xf32>
    %c0_21 = arith.constant 0 : index
    %c0_22 = arith.constant 0 : index
    %23 = vector.load %arg10[%c0_21, %c0_22] : memref<8x16xf32, #tpu.memory_space<vmem>>, vector<8x16xf32>
    tpu.vector_store %arg10[%c0_21, %c0_22], %22 {strides = array<i32>} : memref<8x16xf32, #tpu.memory_space<vmem>>, vector<8x16xf32>,
    return
  }
  func.func @transform_0(%arg0: i32) -> (i32, i32) {
    %c0_i32 = arith.constant 0 : i32
    %c0_i32_0 = arith.constant 0 : i32
    return %arg0, %c0_i32 : i32, i32
  }
  func.func @transform_1(%arg0: i32) -> (i32, i32) {
    %c0_i32 = arith.constant 0 : i32
    %c0_i32_0 = arith.constant 0 : i32
    %c0_i32_1 = arith.constant 0 : i32
    return %c0_i32, %c0_i32_0 : i32, i32
  }
  func.func @transform_2(%arg0: i32) -> (i32, i32) {
    %c0_i32 = arith.constant 0 : i32
    %c0_i32_0 = arith.constant 0 : i32
    %c0_i32_1 = arith.constant 0 : i32
    return %c0_i32, %c0_i32_0 : i32, i32
  }
  func.func @transform_3(%arg0: i32) -> (i32, i32) {
    %c0_i32 = arith.constant 0 : i32
    %c0_i32_0 = arith.constant 0 : i32
    %c0_i32_1 = arith.constant 0 : i32
    return %c0_i32, %c0_i32_0 : i32, i32
  }
  func.func @transform_4(%arg0: i32) -> (i32, i32) {
    %c0_i32 = arith.constant 0 : i32
    %c0_i32_0 = arith.constant 0 : i32
    %c0_i32_1 = arith.constant 0 : i32
    return %c0_i32, %c0_i32_0 : i32, i32
  }
  func.func @transform_5(%arg0: i32) -> (i32, i32) {
    %c0_i32 = arith.constant 0 : i32
    %c0_i32_0 = arith.constant 0 : i32
    %c0_i32_1 = arith.constant 0 : i32
    return %c0_i32, %c0_i32_0 : i32, i32
  }
  func.func @transform_6(%arg0: i32) -> (i32, i32) {
    %c0_i32 = arith.constant 0 : i32
    %c0_i32_0 = arith.constant 0 : i32
    %c0_i32_1 = arith.constant 0 : i32
    return %c0_i32, %c0_i32_0 : i32, i32
  }
  func.func @transform_7(%arg0: i32) -> (i32, i32) {
    %c0_i32 = arith.constant 0 : i32
    %c0_i32_0 = arith.constant 0 : i32
    %c0_i32_1 = arith.constant 0 : i32
    return %c0_i32, %c0_i32_0 : i32, i32
  }
  func.func @transform_8(%arg0: i32) -> (i32, i32) {
    %c0_i32 = arith.constant 0 : i32
    %c0_i32_0 = arith.constant 0 : i32
    return %arg0, %c0_i32 : i32, i32
  }
  func.func @transform_9(%arg0: i32) -> (i32, i32) {
    %c0_i32 = arith.constant 0 : i32
    %c0_i32_0 = arith.constant 0 : i32
    return %arg0, %c0_i32 : i32, i32
  }
}

</mosaic_0001>

<llo_original>
// kernel: tpu_custom_call.1
$region0: #{tpu_custom_call.1}
  #allocation0 [shape = 'u32[]', space=smem, size = 0x4, offset = 0x4, fixed_abs, tag = 'smem constant byte address 0x4 - core index']
  #allocation1 [shape = 'u32[144,128]{1,0:T(1,128)}', space=vmem, size = 0x12000, scoped, tag = 'internal scratch']
  %s0 = inlined_call_operand.vmem [shape: f32[16,4], index: 0, kind: input, shape index: {}]
  %s1 = inlined_call_operand.vmem [shape: f32[4,128], index: 1, kind: input, shape index: {}]
  %s2 = inlined_call_operand.vmem [shape: f32[128,2], index: 2, kind: input, shape index: {}]
  %s3 = inlined_call_operand.vmem [shape: f32[128,2], index: 3, kind: input, shape index: {}]
  %s4 = inlined_call_operand.vmem [shape: f32[128,16], index: 4, kind: input, shape index: {}]
  %s5 = inlined_call_operand.vmem [shape: f32[128,16], index: 5, kind: input, shape index: {}]
  %s6 = inlined_call_operand.vmem [shape: f32[1,2], index: 6, kind: input, shape index: {}]
  %s7 = inlined_call_operand.vmem [shape: f32[1,16], index: 7, kind: input, shape index: {}]
  %s8 = inlined_call_operand.vmem [shape: f32[16,2], index: 8, kind: output, shape index: {0}]
  %s9 = inlined_call_operand.hbm [shape: f32[16,16], index: 9, kind: output, shape index: {1}]
  %10 = xla_tuple %s8, %s9
  %s11 = sld [smem:[#allocation0]]
  $region73: #{tpu_custom_call.1} parent=0
    _
  %s13 = ssub.s32 1, %s11
  %s14 = scalar_select 0, %s13, %s11
  $region1: #{tpu_custom_call.1} parent=0
    #allocation2 [shape = 'u8[8192]{0}', space=vmem, size = 0x2000, scoped, tag = 'output window, operand 1']
    #allocation3 [shape = 's32[2]{0}', space=sflag, size = 0x8, scoped, tag = 'scoped memory for tpu_custom_call.1']
    %15 = vsyncpa [#allocation3], 0
    %s16 = scalar_lea.sflag [#allocation3], 1
    %17 = vsyncpa %s16, 0
    loop: start=0, step=1, limit=4
    $region2: #{tpu_custom_call.1} parent=1 // loop_pre_header
      _
    $region3: #{tpu_custom_call.1} parent=1 // loop_header
      %s19 = sphi 0, %s23
      %p20 = scmp.ge.s32.totalorder %s19, 4
      %s29 = sphi 0, %s31
      %s32 = sphi 0, %s29
      %s33 = sphi 0, %s32
      %s49 = sphi 0, %s33
      %s53 = sphi 0, %s53
      %s55 = sphi 0, %s53
      %s56 = sphi 0, %s55
      %s70 = sphi 0, %s56
      %s74 = sphi 0, %s74
      %s76 = sphi 0, %s74
      %s77 = sphi 0, %s76
      %s91 = sphi 0, %s77
      %s95 = sphi 0, %s95
      %s97 = sphi 0, %s95
      %s98 = sphi 0, %s97
      %s112 = sphi 0, %s98
      %s116 = sphi 0, %s116
      %s118 = sphi 0, %s116
      %s119 = sphi 0, %s118
      %s133 = sphi 0, %s119
      %s137 = sphi 0, %s137
      %s139 = sphi 0, %s137
      %s140 = sphi 0, %s139
      %s154 = sphi 0, %s140
      %s158 = sphi 0, %s158
      %s160 = sphi 0, %s158
      %s161 = sphi 0, %s160
      %s175 = sphi 0, %s161
      %s179 = sphi 0, %s179
      %s181 = sphi 0, %s179
      %s182 = sphi 0, %s181
      %s196 = sphi 0, %s182
      %s202 = sphi 0, %s204
      %s205 = sphi 0, %s202
      %s206 = sphi 0, %s205
      %s222 = sphi 0, %s206
      %s228 = sphi 0, %s230
      %s231 = sphi 0, %s228
      %s232 = sphi 0, %s231
      %s248 = sphi 0, %s232
    $region4: #{tpu_custom_call.1} parent=1 // loop_header_branch
      %22 = sbr.rel (%p20) target = $region8
    $region5: #{tpu_custom_call.1} parent=1 // loop_body
      %s24 = ssub.s32 %s19, 1
      %s25 = ssub.s32 %s19, 2
      %s26 = sadd.s32 %s19, 1
      %s27 = ssub.s32 %s19, %s26
      %p28 = scmp.eq.s32.totalorder %s27, 0
      %s30 = sadd.s32 %s29, 1
      %s31 = scalar_select %p28, %s29, %s30
      %p34 = pneg %p28
      %p35 = scmp.eq.s32.totalorder %s19, 1
      %p36 = por %p34, %p35
      %p37 = scmp.ne.s32.totalorder %s29, %s32
      %p38 = scmp.eq.s32.totalorder %s19, 0
      %p39 = por %p37, %p38
      %p40 = scmp.ne.s32.totalorder %s29, %s32
      %p41 = scmp.eq.s32.totalorder %s24, 1
      %p42 = por %p40, %p41
      %p43 = scmp.ne.s32.totalorder %s32, %s33
      %p44 = scmp.eq.s32.totalorder %s24, 0
      %p45 = por %p43, %p44
      %p46 = scmp.ne.s32.totalorder %s32, %s33
      %p47 = scmp.eq.s32.totalorder %s25, 1
      %p48 = por %p46, %p47
      %p50 = scmp.ne.s32.totalorder %s33, %s49
      %p51 = scmp.eq.s32.totalorder %s25, 0
      %p52 = por %p50, %p51
      %s54 = sadd.s32 %s53, 1
      %p57 = scmp.eq.s32.totalorder %s19, 1
      %p58 = scmp.ne.s32.totalorder %s53, %s55
      %p59 = scmp.eq.s32.totalorder %s19, 0
      %p60 = por %p58, %p59
      %p61 = scmp.ne.s32.totalorder %s53, %s55
      %p62 = scmp.eq.s32.totalorder %s24, 1
      %p63 = por %p61, %p62
      %p64 = scmp.ne.s32.totalorder %s55, %s56
      %p65 = scmp.eq.s32.totalorder %s24, 0
      %p66 = por %p64, %p65
      %p67 = scmp.ne.s32.totalorder %s55, %s56
      %p68 = scmp.eq.s32.totalorder %s25, 1
      %p69 = por %p67, %p68
      %p71 = scmp.ne.s32.totalorder %s56, %s70
      %p72 = scmp.eq.s32.totalorder %s25, 0
      %p73 = por %p71, %p72
      %s75 = sadd.s32 %s74, 1
      %p78 = scmp.eq.s32.totalorder %s19, 1
      %p79 = scmp.ne.s32.totalorder %s74, %s76
      %p80 = scmp.eq.s32.totalorder %s19, 0
      %p81 = por %p79, %p80
      %p82 = scmp.ne.s32.totalorder %s74, %s76
      %p83 = scmp.eq.s32.totalorder %s24, 1
      %p84 = por %p82, %p83
      %p85 = scmp.ne.s32.totalorder %s76, %s77
      %p86 = scmp.eq.s32.totalorder %s24, 0
      %p87 = por %p85, %p86
      %p88 = scmp.ne.s32.totalorder %s76, %s77
      %p89 = scmp.eq.s32.totalorder %s25, 1
      %p90 = por %p88, %p89
      %p92 = scmp.ne.s32.totalorder %s77, %s91
      %p93 = scmp.eq.s32.totalorder %s25, 0
      %p94 = por %p92, %p93
      %s96 = sadd.s32 %s95, 1
      %p99 = scmp.eq.s32.totalorder %s19, 1
      %p100 = scmp.ne.s32.totalorder %s95, %s97
      %p101 = scmp.eq.s32.totalorder %s19, 0
      %p102 = por %p100, %p101
      %p103 = scmp.ne.s32.totalorder %s95, %s97
      %p104 = scmp.eq.s32.totalorder %s24, 1
      %p105 = por %p103, %p104
      %p106 = scmp.ne.s32.totalorder %s97, %s98
      %p107 = scmp.eq.s32.totalorder %s24, 0
      %p108 = por %p106, %p107
      %p109 = scmp.ne.s32.totalorder %s97, %s98
      %p110 = scmp.eq.s32.totalorder %s25, 1
      %p111 = por %p109, %p110
      %p113 = scmp.ne.s32.totalorder %s98, %s112
      %p114 = scmp.eq.s32.totalorder %s25, 0
      %p115 = por %p113, %p114
      %s117 = sadd.s32 %s116, 1
      %p120 = scmp.eq.s32.totalorder %s19, 1
      %p121 = scmp.ne.s32.totalorder %s116, %s118
      %p122 = scmp.eq.s32.totalorder %s19, 0
      %p123 = por %p121, %p122
      %p124 = scmp.ne.s32.totalorder %s116, %s118
      %p125 = scmp.eq.s32.totalorder %s24, 1
      %p126 = por %p124, %p125
      %p127 = scmp.ne.s32.totalorder %s118, %s119
      %p128 = scmp.eq.s32.totalorder %s24, 0
      %p129 = por %p127, %p128
      %p130 = scmp.ne.s32.totalorder %s118, %s119
      %p131 = scmp.eq.s32.totalorder %s25, 1
      %p132 = por %p130, %p131
      %p134 = scmp.ne.s32.totalorder %s119, %s133
      %p135 = scmp.eq.s32.totalorder %s25, 0
      %p136 = por %p134, %p135
      %s138 = sadd.s32 %s137, 1
      %p141 = scmp.eq.s32.totalorder %s19, 1
      %p142 = scmp.ne.s32.totalorder %s137, %s139
      %p143 = scmp.eq.s32.totalorder %s19, 0
      %p144 = por %p142, %p143
      %p145 = scmp.ne.s32.totalorder %s137, %s139
      %p146 = scmp.eq.s32.totalorder %s24, 1
      %p147 = por %p145, %p146
      %p148 = scmp.ne.s32.totalorder %s139, %s140
      %p149 = scmp.eq.s32.totalorder %s24, 0
      %p150 = por %p148, %p149
      %p151 = scmp.ne.s32.totalorder %s139, %s140
      %p152 = scmp.eq.s32.totalorder %s25, 1
      %p153 = por %p151, %p152
      %p155 = scmp.ne.s32.totalorder %s140, %s154
      %p156 = scmp.eq.s32.totalorder %s25, 0
      %p157 = por %p155, %p156
      %s159 = sadd.s32 %s158, 1
      %p162 = scmp.eq.s32.totalorder %s19, 1
      %p163 = scmp.ne.s32.totalorder %s158, %s160
      %p164 = scmp.eq.s32.totalorder %s19, 0
      %p165 = por %p163, %p164
      %p166 = scmp.ne.s32.totalorder %s158, %s160
      %p167 = scmp.eq.s32.totalorder %s24, 1
      %p168 = por %p166, %p167
      %p169 = scmp.ne.s32.totalorder %s160, %s161
      %p170 = scmp.eq.s32.totalorder %s24, 0
      %p171 = por %p169, %p170
      %p172 = scmp.ne.s32.totalorder %s160, %s161
      %p173 = scmp.eq.s32.totalorder %s25, 1
      %p174 = por %p172, %p173
      %p176 = scmp.ne.s32.totalorder %s161, %s175
      %p177 = scmp.eq.s32.totalorder %s25, 0
      %p178 = por %p176, %p177
      %s180 = sadd.s32 %s179, 1
      %p183 = scmp.eq.s32.totalorder %s19, 1
      %p184 = scmp.ne.s32.totalorder %s179, %s181
      %p185 = scmp.eq.s32.totalorder %s19, 0
      %p186 = por %p184, %p185
      %p187 = scmp.ne.s32.totalorder %s179, %s181
      %p188 = scmp.eq.s32.totalorder %s24, 1
      %p189 = por %p187, %p188
      %p190 = scmp.ne.s32.totalorder %s181, %s182
      %p191 = scmp.eq.s32.totalorder %s24, 0
      %p192 = por %p190, %p191
      %p193 = scmp.ne.s32.totalorder %s181, %s182
      %p194 = scmp.eq.s32.totalorder %s25, 1
      %p195 = por %p193, %p194
      %p197 = scmp.ne.s32.totalorder %s182, %s196
      %p198 = scmp.eq.s32.totalorder %s25, 0
      %p199 = por %p197, %p198
      %s200 = ssub.s32 %s19, %s26
      %p201 = scmp.eq.s32.totalorder %s200, 0
      %s203 = sadd.s32 %s202, 1
      %s204 = scalar_select %p201, %s202, %s203
      %p207 = pneg %p201
      %p208 = scmp.eq.s32.totalorder %s19, 1
      %p209 = por %p207, %p208
      %p210 = scmp.ne.s32.totalorder %s202, %s205
      %p211 = scmp.eq.s32.totalorder %s19, 0
      %p212 = por %p210, %p211
      %p213 = scmp.ne.s32.totalorder %s202, %s205
      %p214 = scmp.eq.s32.totalorder %s24, 1
      %p215 = por %p213, %p214
      %p216 = scmp.ne.s32.totalorder %s205, %s206
      %p217 = scmp.eq.s32.totalorder %s24, 0
      %p218 = por %p216, %p217
      %p219 = scmp.ne.s32.totalorder %s205, %s206
      %p220 = scmp.eq.s32.totalorder %s25, 1
      %p221 = por %p219, %p220
      %p223 = scmp.ne.s32.totalorder %s206, %s222
      %p224 = scmp.eq.s32.totalorder %s25, 0
      %p225 = por %p223, %p224
      %s226 = ssub.s32 %s19, %s26
      %p227 = scmp.eq.s32.totalorder %s226, 0
      %s229 = sadd.s32 %s228, 1
      %s230 = scalar_select %p227, %s228, %s229
      %p233 = pneg %p227
      %p234 = scmp.eq.s32.totalorder %s19, 1
      %p235 = por %p233, %p234
      %p236 = scmp.ne.s32.totalorder %s228, %s231
      %p237 = scmp.eq.s32.totalorder %s19, 0
      %p238 = por %p236, %p237
      %p239 = scmp.ne.s32.totalorder %s228, %s231
      %p240 = scmp.eq.s32.totalorder %s24, 1
      %p241 = por %p239, %p240
      %p242 = scmp.ne.s32.totalorder %s231, %s232
      %p243 = scmp.eq.s32.totalorder %s24, 0
      %p244 = por %p242, %p243
      %p245 = scmp.ne.s32.totalorder %s231, %s232
      %p246 = scmp.eq.s32.totalorder %s25, 1
      %p247 = por %p245, %p246
      %p249 = scmp.ne.s32.totalorder %s232, %s248
      %p250 = scmp.eq.s32.totalorder %s25, 0
      %p251 = por %p249, %p250
      %p252 = scmp.le.s32.totalorder 1, %s19
      %p253 = scmp.lt.s32.totalorder %s19, 3
      %p254 = pnand %p252, %p253
      %p255 = pneg %p254
      // Predicated region
      $region9: #{tpu_custom_call.1} parent=5 // pred_check
        _
      $region10: #{tpu_custom_call.1} parent=5 // pred_check_branch
        %257 = sbr.rel (%p254) target = $region12
      $region11: #{tpu_custom_call.1} parent=5 // pred_region
        %s258 = ssub.s32 %s19, 1
        // Predicated region
        $region13: #{tpu_custom_call.1} parent=11 // pred_check
          %p259 = pneg %p66
        $region14: #{tpu_custom_call.1} parent=11 // pred_check_branch
          %261 = sbr.rel (%p259) target = $region16
        $region15: #{tpu_custom_call.1} parent=11 // pred_region
          _
        $region16: #{tpu_custom_call.1} parent=11 // pred_fallthru
          _
        // Predicated region
        $region17: #{tpu_custom_call.1} parent=11 // pred_check
          %p262 = pneg %p87
        $region18: #{tpu_custom_call.1} parent=11 // pred_check_branch
          %264 = sbr.rel (%p262) target = $region20
        $region19: #{tpu_custom_call.1} parent=11 // pred_region
          _
        $region20: #{tpu_custom_call.1} parent=11 // pred_fallthru
          _
        // Predicated region
        $region21: #{tpu_custom_call.1} parent=11 // pred_check
          %p265 = pneg %p108
        $region22: #{tpu_custom_call.1} parent=11 // pred_check_branch
          %267 = sbr.rel (%p265) target = $region24
        $region23: #{tpu_custom_call.1} parent=11 // pred_region
          _
        $region24: #{tpu_custom_call.1} parent=11 // pred_fallthru
          _
        // Predicated region
        $region25: #{tpu_custom_call.1} parent=11 // pred_check
          %p268 = pneg %p129
        $region26: #{tpu_custom_call.1} parent=11 // pred_check_branch
          %270 = sbr.rel (%p268) target = $region28
        $region27: #{tpu_custom_call.1} parent=11 // pred_region
          _
        $region28: #{tpu_custom_call.1} parent=11 // pred_fallthru
          _
        // Predicated region
        $region29: #{tpu_custom_call.1} parent=11 // pred_check
          %p271 = pneg %p150
        $region30: #{tpu_custom_call.1} parent=11 // pred_check_branch
          %273 = sbr.rel (%p271) target = $region32
        $region31: #{tpu_custom_call.1} parent=11 // pred_region
          _
        $region32: #{tpu_custom_call.1} parent=11 // pred_fallthru
          _
        // Predicated region
        $region33: #{tpu_custom_call.1} parent=11 // pred_check
          %p274 = pneg %p171
        $region34: #{tpu_custom_call.1} parent=11 // pred_check_branch
          %276 = sbr.rel (%p274) target = $region36
        $region35: #{tpu_custom_call.1} parent=11 // pred_region
          _
        $region36: #{tpu_custom_call.1} parent=11 // pred_fallthru
          _
        // Predicated region
        $region37: #{tpu_custom_call.1} parent=11 // pred_check
          %p277 = pneg %p192
        $region38: #{tpu_custom_call.1} parent=11 // pred_check_branch
          %279 = sbr.rel (%p277) target = $region40
        $region39: #{tpu_custom_call.1} parent=11 // pred_region
          _
        $region40: #{tpu_custom_call.1} parent=11 // pred_fallthru
          _
      $region12: #{tpu_custom_call.1} parent=5 // pred_fallthru
        _
      %p280 = scmp.lt.s32.totalorder %s19, 2
      // Predicated region
      $region41: #{tpu_custom_call.1} parent=5 // pred_check
        %p281 = pneg %p280
      $region42: #{tpu_custom_call.1} parent=5 // pred_check_branch
        %283 = sbr.rel (%p281) target = $region44
      $region43: #{tpu_custom_call.1} parent=5 // pred_region
        // Predicated region
        $region45: #{tpu_custom_call.1} parent=43 // pred_check
          %p284 = pneg %p39
        $region46: #{tpu_custom_call.1} parent=43 // pred_check_branch
          %286 = sbr.rel (%p284) target = $region48
        $region47: #{tpu_custom_call.1} parent=43 // pred_region
          %p287 = scmp.lt.s32.totalorder %s19, 1
          %s288 = scalar_select %p287, %s19, 1
          %s289 = smul.addr %s288, 8
          %s290 = scalar_lea.vmem %s0, %s289
        $region48: #{tpu_custom_call.1} parent=43 // pred_fallthru
          _
      $region44: #{tpu_custom_call.1} parent=5 // pred_fallthru
        _
      %p291 = scmp.le.s32.totalorder 1, %s19
      %p292 = scmp.lt.s32.totalorder %s19, 3
      %p293 = pnand %p291, %p292
      %p294 = pneg %p293
      // Predicated region
      $region49: #{tpu_custom_call.1} parent=5 // pred_check
        _
      $region50: #{tpu_custom_call.1} parent=5 // pred_check_branch
        %296 = sbr.rel (%p293) target = $region52
      $region51: #{tpu_custom_call.1} parent=5 // pred_region
        %s297 = ssub.s32 %s19, 1
        %p298 = scmp.lt.s32.totalorder %s24, 1
        %s299 = scalar_select %p298, %s24, 1
        %s300 = smul.addr %s299, 8
        %s301 = scalar_lea.vmem %s0, %s300
        %p302 = pneg %p45
        %p303 = pneg %p42
        %p304 = pneg %p66
        %p305 = pneg %p63
        %p306 = pneg %p87
        %p307 = pneg %p84
        %p308 = pneg %p108
        %p309 = pneg %p105
        %p310 = pneg %p129
        %p311 = pneg %p126
        %p312 = pneg %p150
        %p313 = pneg %p147
        %p314 = pneg %p171
        %p315 = pneg %p168
        %p316 = pneg %p192
        %p317 = pneg %p189
        %p318 = pneg %p218
        %p319 = pneg %p215
        %p320 = scmp.lt.s32.totalorder %s24, 1
        %s321 = scalar_select %p320, %s24, 1
        %s322 = smul.addr %s321, 8
        %s323 = scalar_lea.vmem %s8, %s322
        %p324 = pneg %p244
        %p325 = pneg %p241
        %s326 = sand.u32 %s231, 1
        %s327 = scalar_lea.sflag [#allocation3], %s326
        %s328 = sand.u32 %s231, 1
        %s329 = smul.addr %s328, 8
        %s330 = scalar_lea.vmem [#allocation2], %s329
        %p331 = scmp.lt.s32.totalorder %s24, 1
        %s332 = scalar_select %p331, %s24, 1
        %s333 = smul.addr %s332, 8
        %s334 = scalar_lea.vmem %s0, %s333
        %p335 = scmp.lt.s32.totalorder %s24, 1
        %s336 = scalar_select %p335, %s24, 1
        %s337 = smul.addr %s336, 8
        %s338 = scalar_lea.vmem %s8, %s337
        %v339 = vld [vmem:[%s334] sm:$0xff]
        %v340 = vld [vmem:[%s1] sm:$0xf]
        %vm341 = vcmask 31744
        %v343 = vsel %vm341, %v339, 0
        %vm345 = vcmask 1043456
        %v347 = vsel %vm345, %v340, 0
        %349 = vmatprep.subr.mxu0 0.0
        %350 = vmatpush1.msra.mxu0 %v347
        %351 = vmatprep.subr.mxu0 0.0
        %352 = vmatpush1.msra.mxu0 0.0
        %353 = vmatprep.subr.mxu0 0.0
        %354 = vmatpush1.msra.mxu0 0.0
        %355 = vmatprep.subr.mxu0 0.0
        %356 = vmatpush1.msra.mxu0 0.0
        %357 = vmatprep.subr.mxu0 0.0
        %358 = vmatpush1.msra.mxu0 0.0
        %359 = vmatprep.subr.mxu0 0.0
        %360 = vmatpush1.msra.mxu0 0.0
        %361 = vmatprep.subr.mxu0 0.0
        %362 = vmatpush1.msra.mxu0 0.0
        %363 = vmatprep.subr.mxu0 0.0
        %364 = vmatpush1.msra.mxu0 0.0
        %365 = vmatprep.subr.mxu0 0.0
        %366 = vmatpush1.msra.mxu0 0.0
        %367 = vmatprep.subr.mxu0 0.0
        %368 = vmatpush1.msra.mxu0 0.0
        %369 = vmatprep.subr.mxu0 0.0
        %370 = vmatpush1.msra.mxu0 0.0
        %371 = vmatprep.subr.mxu0 0.0
        %372 = vmatpush1.msra.mxu0 0.0
        %373 = vmatprep.subr.mxu0 0.0
        %374 = vmatpush1.msra.mxu0 0.0
        %375 = vmatprep.subr.mxu0 0.0
        %376 = vmatpush1.msra.mxu0 0.0
        %377 = vmatprep.subr.mxu0 0.0
        %378 = vmatpush1.msra.mxu0 0.0
        %379 = vmatprep.subr.mxu0 0.0
        %380 = vmatpush1.msra.mxu0 0.0
        %381 = vmatprep.subr.mxu0 0.0
        %382 = vmatpush1.msra.mxu0 0.0
        %383 = vmatprep.subr.mxu0 0.0
        %384 = vmatpush1.msra.mxu0 0.0
        %385 = vmatprep.subr.mxu0 0.0
        %386 = vmatpush1.msra.mxu0 0.0
        %387 = vmatprep.subr.mxu0 0.0
        %388 = vmatpush1.msra.mxu0 0.0
        %389 = vmatprep.subr.mxu0 0.0
        %390 = vmatpush1.msra.mxu0 0.0
        %391 = vmatprep.subr.mxu0 0.0
        %392 = vmatpush1.msra.mxu0 0.0
        %393 = vmatprep.subr.mxu0 0.0
        %394 = vmatpush1.msra.mxu0 0.0
        %395 = vmatprep.subr.mxu0 0.0
        %396 = vmatpush1.msra.mxu0 0.0
        %397 = vmatprep.subr.mxu0 0.0
        %398 = vmatpush1.msra.mxu0 0.0
        %399 = vmatprep.subr.mxu0 0.0
        %400 = vmatpush1.msra.mxu0 0.0
        %401 = vmatprep.subr.mxu0 0.0
        %402 = vmatpush1.msra.mxu0 0.0
        %403 = vmatprep.subr.mxu0 0.0
        %404 = vmatpush1.msra.mxu0 0.0
        %405 = vmatprep.subr.mxu0 0.0
        %406 = vmatpush1.msra.mxu0 0.0
        %407 = vmatprep.subr.mxu0 0.0
        %408 = vmatpush1.msra.mxu0 0.0
        %409 = vmatprep.subr.mxu0 0.0
        %410 = vmatpush1.msra.mxu0 0.0
        %411 = vmatprep.subr.mxu0 0.0
        %412 = vmatpush1.msra.mxu0 0.0
        %413 = vmatprep.mubr.f32.mxu0 0.0
        %414 = vmatmul.mubr.f32.gmra.mrb[0].mxu0 %v343
        %v415 = vpop.f32.mrb[0].mxu0
        %v416 = vadd.f32 0.0, %v415
        %v417 = vpop.f32.mrb[0].mxu0
        %418 = vdwg.mxu0
        %v419 = vand.u32 2147483647, %v416
        %vm420 = vcmp.le.f32.partialorder %v419, 0.7853982
        %vm421 = vcmp.lt.s32.totalorder %v416, 0
        %v422 = vand.u32 %v416, 2139095040
        %v423 = vshrl.u32 %v422, 23
        %v424 = vsub.s32 %v423, 127
        %v425 = vand.u32 2147483647, %v416
        %v426 = vand.u32 %v425, 8388607
        %v427 = vor.u32 %v426, 8388608
        %v428 = vsub.s32 0, %v427
        %v429 = vadd.s32 %v424, 1
        %vm430 = vcmp.gt.s32.totalorder %v429, 0
        %v431 = vsel %vm430, %v429, 0
        %v432 = vshrl.u32 %v431, 5
        %v433 = vand.u32 %v431, 31
        %v434 = vsub.s32 32, %v433
        %v435 = vshrl.u32 683565275, %v434
        %v436 = vshll.u32 683565275, %v433
        %v437 = vshrl.u32 2475754826, %v434
        %v438 = vor.u32 %v436, %v437
        %v439 = vshll.u32 2475754826, %v433
        %v440 = vshrl.u32 2131351028, %v434
        %v441 = vor.u32 %v439, %v440
        %v442 = vshll.u32 2131351028, %v433
        %v443 = vshrl.u32 2102212464, %v434
        %v444 = vor.u32 %v442, %v443
        %v445 = vshll.u32 2102212464, %v433
        %v446 = vshrl.u32 920167782, %v434
        %v447 = vor.u32 %v445, %v446
        %v448 = vshll.u32 920167782, %v433
        %v449 = vshrl.u32 1326507024, %v434
        %v450 = vor.u32 %v448, %v449
        %vm451 = vcmp.lt.s32.totalorder %v432, 1
        %vm452 = vcmp.lt.s32.totalorder %v432, 2
        %vm453 = vcmp.lt.s32.totalorder %v432, 3
        %vm454 = vcmp.lt.s32.totalorder %v432, 4
        %v455 = vsel %vm451, %v435, %v438
        %v456 = vsel %vm454, %v444, 2102212464
        %v457 = vsel %vm453, %v441, %v456
        %v458 = vsel %vm452, %v455, %v457
        %v459 = vsel %vm451, %v438, %v441
        %v460 = vsel %vm454, %v447, 920167782
        %v461 = vsel %vm453, %v444, %v460
        %v462 = vsel %vm452, %v459, %v461
        %v463 = vsel %vm451, %v441, %v444
        %v464 = vsel %vm454, %v450, 1326507024
        %v465 = vsel %vm453, %v447, %v464
        %v466 = vsel %vm452, %v463, %v465
        %v467 = vshll.u32 %v427, 8
        %v468 = vmul.u32.u64.compose %v467, %v466
        %v469 = vextract.low.u32 %v468
        %v470 = vextract.high.u32 %v468
        %v471 = vmul.u32.u64.compose %v467, %v462
        %v472 = vextract.low.u32 %v471
        %v473 = vextract.high.u32 %v471
        %v474 = vmul.u32 %v467, %v458
        %v475 = vadd.s32 %v470, %v472
        %vm476 = vc.u32 %v470, %v472
        %v477 = vadd.s32 %v473, 1
        %v478 = vsel %vm476, %v477, %v473
        %v479 = vadd.s32 %v474, %v478
        %v480 = vadd.s32 %v479, 536870912
        %v481 = vshrl.u32 %v480, 30
        %v482 = vshll.u32 %v481, 30
        %v483 = vsub.s32 %v479, %v482
        %vm484 = vcmp.lt.s32.totalorder %v483, 0
        %v485 = vsub.s32 0, %v483
        %v486 = vsel %vm484, %v485, %v483
        %v487 = vclz %v486
        %v488 = vsub.s32 %v487, 2
        %vm489 = vcmp.gt.s32.totalorder 0, %v488
        %v490 = vsel %vm489, 0, %v488
        %v491 = vsub.s32 32, %v490
        %v492 = vshll.u32 %v483, %v490
        %v493 = vshrl.u32 %v475, %v491
        %v494 = vor.u32 %v492, %v493
        %v495 = vsub.s32 4294967266, %v490
        %v496 = vadd.s32 %v495, 127
        %v497 = vshll.u32 %v496, 23
        %v498 = vor.u32 4788187, %v497
        %v499 = vand.u32 2147483647, %v498
        %v501 = vcvt.s32.f32 %v494
        %v502 = vmul.f32 %v501, %v499
        %v503 = vxor.u32 %v502, 2147483648
        %v504 = vsel %vm421, %v503, %v502
        %v505 = vsub.s32 4, %v481
        %v506 = vsel %vm421, %v505, %v481
        %v507 = vsel %vm420, %v416, %v504
        %v508 = vsel %vm420, 0, %v506
        %v509 = vcosq.f32.pop %v507
        %v510 = vsinq.f32.pop %v507
        %vm511 = vweird.f32 %v416
        %v512 = vand.u32 %v508, 3
        %vm513 = vcmp.lt.s32.totalorder %v512, 2
        %vm514 = vcmp.eq.s32.totalorder %v512, 0
        %v515 = vxor.u32 %v510, 2147483648
        %v516 = vsel %vm514, %v509, %v515
        %vm517 = vcmp.eq.s32.totalorder %v512, 2
        %v518 = vxor.u32 %v509, 2147483648
        %v519 = vsel %vm517, %v518, %v510
        %v520 = vsel %vm513, %v516, %v519
        %v521 = vsel %vm511, nan, %v520
        %v522 = vand.u32 2147483647, %v416
        %vm523 = vcmp.le.f32.partialorder %v522, 0.7853982
        %vm524 = vcmp.lt.s32.totalorder %v416, 0
        %v525 = vand.u32 %v416, 2139095040
        %v526 = vshrl.u32 %v525, 23
        %v527 = vsub.s32 %v526, 127
        %v528 = vand.u32 2147483647, %v416
        %v529 = vand.u32 %v528, 8388607
        %v530 = vor.u32 %v529, 8388608
        %v531 = vsub.s32 0, %v530
        %v532 = vadd.s32 %v527, 1
        %vm533 = vcmp.gt.s32.totalorder %v532, 0
        %v534 = vsel %vm533, %v532, 0
        %v535 = vshrl.u32 %v534, 5
        %v536 = vand.u32 %v534, 31
        %v537 = vsub.s32 32, %v536
        %v538 = vshrl.u32 683565275, %v537
        %v539 = vshll.u32 683565275, %v536
        %v540 = vshrl.u32 2475754826, %v537
        %v541 = vor.u32 %v539, %v540
        %v542 = vshll.u32 2475754826, %v536
        %v543 = vshrl.u32 2131351028, %v537
        %v544 = vor.u32 %v542, %v543
        %v545 = vshll.u32 2131351028, %v536
        %v546 = vshrl.u32 2102212464, %v537
        %v547 = vor.u32 %v545, %v546
        %v548 = vshll.u32 2102212464, %v536
        %v549 = vshrl.u32 920167782, %v537
        %v550 = vor.u32 %v548, %v549
        %v551 = vshll.u32 920167782, %v536
        %v552 = vshrl.u32 1326507024, %v537
        %v553 = vor.u32 %v551, %v552
        %vm554 = vcmp.lt.s32.totalorder %v535, 1
        %vm555 = vcmp.lt.s32.totalorder %v535, 2
        %vm556 = vcmp.lt.s32.totalorder %v535, 3
        %vm557 = vcmp.lt.s32.totalorder %v535, 4
        %v558 = vsel %vm554, %v538, %v541
        %v559 = vsel %vm557, %v547, 2102212464
        %v560 = vsel %vm556, %v544, %v559
        %v561 = vsel %vm555, %v558, %v560
        %v562 = vsel %vm554, %v541, %v544
        %v563 = vsel %vm557, %v550, 920167782
        %v564 = vsel %vm556, %v547, %v563
        %v565 = vsel %vm555, %v562, %v564
        %v566 = vsel %vm554, %v544, %v547
        %v567 = vsel %vm557, %v553, 1326507024
        %v568 = vsel %vm556, %v550, %v567
        %v569 = vsel %vm555, %v566, %v568
        %v570 = vshll.u32 %v530, 8
        %v571 = vmul.u32.u64.compose %v570, %v569
        %v572 = vextract.low.u32 %v571
        %v573 = vextract.high.u32 %v571
        %v574 = vmul.u32.u64.compose %v570, %v565
        %v575 = vextract.low.u32 %v574
        %v576 = vextract.high.u32 %v574
        %v577 = vmul.u32 %v570, %v561
        %v578 = vadd.s32 %v573, %v575
        %vm579 = vc.u32 %v573, %v575
        %v580 = vadd.s32 %v576, 1
        %v581 = vsel %vm579, %v580, %v576
        %v582 = vadd.s32 %v577, %v581
        %v583 = vadd.s32 %v582, 536870912
        %v584 = vshrl.u32 %v583, 30
        %v585 = vshll.u32 %v584, 30
        %v586 = vsub.s32 %v582, %v585
        %vm587 = vcmp.lt.s32.totalorder %v586, 0
        %v588 = vsub.s32 0, %v586
        %v589 = vsel %vm587, %v588, %v586
        %v590 = vclz %v589
        %v591 = vsub.s32 %v590, 2
        %vm592 = vcmp.gt.s32.totalorder 0, %v591
        %v593 = vsel %vm592, 0, %v591
        %v594 = vsub.s32 32, %v593
        %v595 = vshll.u32 %v586, %v593
        %v596 = vshrl.u32 %v578, %v594
        %v597 = vor.u32 %v595, %v596
        %v598 = vsub.s32 4294967266, %v593
        %v599 = vadd.s32 %v598, 127
        %v600 = vshll.u32 %v599, 23
        %v601 = vor.u32 4788187, %v600
        %v602 = vand.u32 2147483647, %v601
        %v604 = vcvt.s32.f32 %v597
        %v605 = vmul.f32 %v604, %v602
        %v606 = vxor.u32 %v605, 2147483648
        %v607 = vsel %vm524, %v606, %v605
        %v608 = vsub.s32 4, %v584
        %v609 = vsel %vm524, %v608, %v584
        %v610 = vsel %vm523, %v416, %v607
        %v611 = vsel %vm523, 0, %v609
        %v612 = vcosq.f32.pop %v610
        %v613 = vsinq.f32.pop %v610
        %vm614 = vweird.f32 %v416
        %v615 = vadd.s32 %v611, 3
        %v616 = vand.u32 %v615, 3
        %vm617 = vcmp.lt.s32.totalorder %v616, 2
        %vm618 = vcmp.eq.s32.totalorder %v616, 0
        %v619 = vxor.u32 %v613, 2147483648
        %v620 = vsel %vm618, %v612, %v619
        %vm621 = vcmp.eq.s32.totalorder %v616, 2
        %v622 = vxor.u32 %v612, 2147483648
        %v623 = vsel %vm621, %v622, %v613
        %v624 = vsel %vm617, %v620, %v623
        %v625 = vsel %vm614, nan, %v624
        %v626 = vld [vmem:[%s2] sm:$0xff]
        %v627 = vld [vmem:[%s2 + $0x8] sm:$0xff]
        %v628 = vld [vmem:[%s2 + $0x10] sm:$0xff]
        %v629 = vld [vmem:[%s2 + $0x18] sm:$0xff]
        %v630 = vld [vmem:[%s2 + $0x20] sm:$0xff]
        %v631 = vld [vmem:[%s2 + $0x28] sm:$0xff]
        %v632 = vld [vmem:[%s2 + $0x30] sm:$0xff]
        %v633 = vld [vmem:[%s2 + $0x38] sm:$0xff]
        %v634 = vld [vmem:[%s2 + $0x40] sm:$0xff]
        %v635 = vld [vmem:[%s2 + $0x48] sm:$0xff]
        %v636 = vld [vmem:[%s2 + $0x50] sm:$0xff]
        %v637 = vld [vmem:[%s2 + $0x58] sm:$0xff]
        %v638 = vld [vmem:[%s2 + $0x60] sm:$0xff]
        %v639 = vld [vmem:[%s2 + $0x68] sm:$0xff]
        %v640 = vld [vmem:[%s2 + $0x70] sm:$0xff]
        %v641 = vld [vmem:[%s2 + $0x78] sm:$0xff]
        %v642 = vld [vmem:[%s3] sm:$0xff]
        %v643 = vld [vmem:[%s3 + $0x8] sm:$0xff]
        %v644 = vld [vmem:[%s3 + $0x10] sm:$0xff]
        %v645 = vld [vmem:[%s3 + $0x18] sm:$0xff]
        %v646 = vld [vmem:[%s3 + $0x20] sm:$0xff]
        %v647 = vld [vmem:[%s3 + $0x28] sm:$0xff]
        %v648 = vld [vmem:[%s3 + $0x30] sm:$0xff]
        %v649 = vld [vmem:[%s3 + $0x38] sm:$0xff]
        %v650 = vld [vmem:[%s3 + $0x40] sm:$0xff]
        %v651 = vld [vmem:[%s3 + $0x48] sm:$0xff]
        %v652 = vld [vmem:[%s3 + $0x50] sm:$0xff]
        %v653 = vld [vmem:[%s3 + $0x58] sm:$0xff]
        %v654 = vld [vmem:[%s3 + $0x60] sm:$0xff]
        %v655 = vld [vmem:[%s3 + $0x68] sm:$0xff]
        %v656 = vld [vmem:[%s3 + $0x70] sm:$0xff]
        %v657 = vld [vmem:[%s3 + $0x78] sm:$0xff]
        %658 = vmatprep.subr.mxu0 0.0
        %659 = vmatpush1.msra.mxu0 %v642
        %660 = vmatprep.subr.mxu0 0.0
        %661 = vmatpush1.msra.mxu0 %v643
        %662 = vmatprep.subr.mxu0 0.0
        %663 = vmatpush1.msra.mxu0 %v644
        %664 = vmatprep.subr.mxu0 0.0
        %665 = vmatpush1.msra.mxu0 %v645
        %666 = vmatprep.subr.mxu0 0.0
        %667 = vmatpush1.msra.mxu0 %v646
        %668 = vmatprep.subr.mxu0 0.0
        %669 = vmatpush1.msra.mxu0 %v647
        %670 = vmatprep.subr.mxu0 0.0
        %671 = vmatpush1.msra.mxu0 %v648
        %672 = vmatprep.subr.mxu0 0.0
        %673 = vmatpush1.msra.mxu0 %v649
        %674 = vmatprep.subr.mxu0 0.0
        %675 = vmatpush1.msra.mxu0 %v650
        %676 = vmatprep.subr.mxu0 0.0
        %677 = vmatpush1.msra.mxu0 %v651
        %678 = vmatprep.subr.mxu0 0.0
        %679 = vmatpush1.msra.mxu0 %v652
        %680 = vmatprep.subr.mxu0 0.0
        %681 = vmatpush1.msra.mxu0 %v653
        %682 = vmatprep.subr.mxu0 0.0
        %683 = vmatpush1.msra.mxu0 %v654
        %684 = vmatprep.subr.mxu0 0.0
        %685 = vmatpush1.msra.mxu0 %v655
        %686 = vmatprep.subr.mxu0 0.0
        %687 = vmatpush1.msra.mxu0 %v656
        %688 = vmatprep.subr.mxu0 0.0
        %689 = vmatpush1.msra.mxu0 %v657
        %690 = vmatprep.subr.mxu0 0.0
        %691 = vmatpush1.msra.mxu0 0.0
        %692 = vmatprep.subr.mxu0 0.0
        %693 = vmatpush1.msra.mxu0 0.0
        %694 = vmatprep.subr.mxu0 0.0
        %695 = vmatpush1.msra.mxu0 0.0
        %696 = vmatprep.subr.mxu0 0.0
        %697 = vmatpush1.msra.mxu0 0.0
        %698 = vmatprep.subr.mxu0 0.0
        %699 = vmatpush1.msra.mxu0 0.0
        %700 = vmatprep.subr.mxu0 0.0
        %701 = vmatpush1.msra.mxu0 0.0
        %702 = vmatprep.subr.mxu0 0.0
        %703 = vmatpush1.msra.mxu0 0.0
        %704 = vmatprep.subr.mxu0 0.0
        %705 = vmatpush1.msra.mxu0 0.0
        %706 = vmatprep.subr.mxu0 0.0
        %707 = vmatpush1.msra.mxu0 0.0
        %708 = vmatprep.subr.mxu0 0.0
        %709 = vmatpush1.msra.mxu0 0.0
        %710 = vmatprep.subr.mxu0 0.0
        %711 = vmatpush1.msra.mxu0 0.0
        %712 = vmatprep.subr.mxu0 0.0
        %713 = vmatpush1.msra.mxu0 0.0
        %714 = vmatprep.subr.mxu0 0.0
        %715 = vmatpush1.msra.mxu0 0.0
        %716 = vmatprep.subr.mxu0 0.0
        %717 = vmatpush1.msra.mxu0 0.0
        %718 = vmatprep.subr.mxu0 0.0
        %719 = vmatpush1.msra.mxu0 0.0
        %720 = vmatprep.subr.mxu0 0.0
        %721 = vmatpush1.msra.mxu0 0.0
        %722 = vmatprep.mubr.f32.mxu0 0.0
        %723 = vmatmul.mubr.f32.gmra.mrb[0].mxu0 %v625
        %v724 = vpop.f32.mrb[0].mxu0
        %v725 = vadd.f32 0.0, %v724
        %v726 = vpop.f32.mrb[0].mxu0
        %727 = vdwg.mxu0
        %728 = vmatprep.subr.mxu0 0.0
        %729 = vmatpush1.msra.mxu0 %v626
        %730 = vmatprep.subr.mxu0 0.0
        %731 = vmatpush1.msra.mxu0 %v627
        %732 = vmatprep.subr.mxu0 0.0
        %733 = vmatpush1.msra.mxu0 %v628
        %734 = vmatprep.subr.mxu0 0.0
        %735 = vmatpush1.msra.mxu0 %v629
        %736 = vmatprep.subr.mxu0 0.0
        %737 = vmatpush1.msra.mxu0 %v630
        %738 = vmatprep.subr.mxu0 0.0
        %739 = vmatpush1.msra.mxu0 %v631
        %740 = vmatprep.subr.mxu0 0.0
        %741 = vmatpush1.msra.mxu0 %v632
        %742 = vmatprep.subr.mxu0 0.0
        %743 = vmatpush1.msra.mxu0 %v633
        %744 = vmatprep.subr.mxu0 0.0
        %745 = vmatpush1.msra.mxu0 %v634
        %746 = vmatprep.subr.mxu0 0.0
        %747 = vmatpush1.msra.mxu0 %v635
        %748 = vmatprep.subr.mxu0 0.0
        %749 = vmatpush1.msra.mxu0 %v636
        %750 = vmatprep.subr.mxu0 0.0
        %751 = vmatpush1.msra.mxu0 %v637
        %752 = vmatprep.subr.mxu0 0.0
        %753 = vmatpush1.msra.mxu0 %v638
        %754 = vmatprep.subr.mxu0 0.0
        %755 = vmatpush1.msra.mxu0 %v639
        %756 = vmatprep.subr.mxu0 0.0
        %757 = vmatpush1.msra.mxu0 %v640
        %758 = vmatprep.subr.mxu0 0.0
        %759 = vmatpush1.msra.mxu0 %v641
        %760 = vmatprep.subr.mxu0 0.0
        %761 = vmatpush1.msra.mxu0 0.0
        %762 = vmatprep.subr.mxu0 0.0
        %763 = vmatpush1.msra.mxu0 0.0
        %764 = vmatprep.subr.mxu0 0.0
        %765 = vmatpush1.msra.mxu0 0.0
        %766 = vmatprep.subr.mxu0 0.0
        %767 = vmatpush1.msra.mxu0 0.0
        %768 = vmatprep.subr.mxu0 0.0
        %769 = vmatpush1.msra.mxu0 0.0
        %770 = vmatprep.subr.mxu0 0.0
        %771 = vmatpush1.msra.mxu0 0.0
        %772 = vmatprep.subr.mxu0 0.0
        %773 = vmatpush1.msra.mxu0 0.0
        %774 = vmatprep.subr.mxu0 0.0
        %775 = vmatpush1.msra.mxu0 0.0
        %776 = vmatprep.subr.mxu0 0.0
        %777 = vmatpush1.msra.mxu0 0.0
        %778 = vmatprep.subr.mxu0 0.0
        %779 = vmatpush1.msra.mxu0 0.0
        %780 = vmatprep.subr.mxu0 0.0
        %781 = vmatpush1.msra.mxu0 0.0
        %782 = vmatprep.subr.mxu0 0.0
        %783 = vmatpush1.msra.mxu0 0.0
        %784 = vmatprep.subr.mxu0 0.0
        %785 = vmatpush1.msra.mxu0 0.0
        %786 = vmatprep.subr.mxu0 0.0
        %787 = vmatpush1.msra.mxu0 0.0
        %788 = vmatprep.subr.mxu0 0.0
        %789 = vmatpush1.msra.mxu0 0.0
        %790 = vmatprep.subr.mxu0 0.0
        %791 = vmatpush1.msra.mxu0 0.0
        %792 = vmatprep.mubr.f32.mxu0 0.0
        %793 = vmatmul.mubr.f32.gmra.mrb[0].mxu0 %v521
        %v794 = vpop.f32.mrb[0].mxu0
        %v795 = vadd.f32 %v725, %v794
        %v796 = vpop.f32.mrb[0].mxu0
        %797 = vdwg.mxu0
        %v798 = vld [vmem:[%s6] sm:$0x1]
        %v800 = vlaneseq
        %v801 = vshrl.u32 %v800, 7
        %v802 = vsub.s32 0, %v801
        %v803 = vrot.slane %v798, %v802
        %v805 = vadd.f32 %v795, %v803
        %v806 = vmul.f32 %v805, 1.442695
        %v807 = vpow.pop %v806
        %vm808 = vcmask 15360
        %809 = vst.msk [vmem:[%s338] sm:$0xff] %vm808, %v807
        %v810 = vld [vmem:[%s4] sm:$0xff]
        %v811 = vld [vmem:[%s4 + $0x8] sm:$0xff]
        %v812 = vld [vmem:[%s4 + $0x10] sm:$0xff]
        %v813 = vld [vmem:[%s4 + $0x18] sm:$0xff]
        %v814 = vld [vmem:[%s4 + $0x20] sm:$0xff]
        %v815 = vld [vmem:[%s4 + $0x28] sm:$0xff]
        %v816 = vld [vmem:[%s4 + $0x30] sm:$0xff]
        %v817 = vld [vmem:[%s4 + $0x38] sm:$0xff]
        %v818 = vld [vmem:[%s4 + $0x40] sm:$0xff]
        %v819 = vld [vmem:[%s4 + $0x48] sm:$0xff]
        %v820 = vld [vmem:[%s4 + $0x50] sm:$0xff]
        %v821 = vld [vmem:[%s4 + $0x58] sm:$0xff]
        %v822 = vld [vmem:[%s4 + $0x60] sm:$0xff]
        %v823 = vld [vmem:[%s4 + $0x68] sm:$0xff]
        %v824 = vld [vmem:[%s4 + $0x70] sm:$0xff]
        %v825 = vld [vmem:[%s4 + $0x78] sm:$0xff]
        %v826 = vld [vmem:[%s5] sm:$0xff]
        %v827 = vld [vmem:[%s5 + $0x8] sm:$0xff]
        %v828 = vld [vmem:[%s5 + $0x10] sm:$0xff]
        %v829 = vld [vmem:[%s5 + $0x18] sm:$0xff]
        %v830 = vld [vmem:[%s5 + $0x20] sm:$0xff]
        %v831 = vld [vmem:[%s5 + $0x28] sm:$0xff]
        %v832 = vld [vmem:[%s5 + $0x30] sm:$0xff]
        %v833 = vld [vmem:[%s5 + $0x38] sm:$0xff]
        %v834 = vld [vmem:[%s5 + $0x40] sm:$0xff]
        %v835 = vld [vmem:[%s5 + $0x48] sm:$0xff]
        %v836 = vld [vmem:[%s5 + $0x50] sm:$0xff]
        %v837 = vld [vmem:[%s5 + $0x58] sm:$0xff]
        %v838 = vld [vmem:[%s5 + $0x60] sm:$0xff]
        %v839 = vld [vmem:[%s5 + $0x68] sm:$0xff]
        %v840 = vld [vmem:[%s5 + $0x70] sm:$0xff]
        %v841 = vld [vmem:[%s5 + $0x78] sm:$0xff]
        %842 = vmatprep.subr.mxu0 0.0
        %843 = vmatpush1.msra.mxu0 %v826
        %844 = vmatprep.subr.mxu0 0.0
        %845 = vmatpush1.msra.mxu0 %v827
        %846 = vmatprep.subr.mxu0 0.0
        %847 = vmatpush1.msra.mxu0 %v828
        %848 = vmatprep.subr.mxu0 0.0
        %849 = vmatpush1.msra.mxu0 %v829
        %850 = vmatprep.subr.mxu0 0.0
        %851 = vmatpush1.msra.mxu0 %v830
        %852 = vmatprep.subr.mxu0 0.0
        %853 = vmatpush1.msra.mxu0 %v831
        %854 = vmatprep.subr.mxu0 0.0
        %855 = vmatpush1.msra.mxu0 %v832
        %856 = vmatprep.subr.mxu0 0.0
        %857 = vmatpush1.msra.mxu0 %v833
        %858 = vmatprep.subr.mxu0 0.0
        %859 = vmatpush1.msra.mxu0 %v834
        %860 = vmatprep.subr.mxu0 0.0
        %861 = vmatpush1.msra.mxu0 %v835
        %862 = vmatprep.subr.mxu0 0.0
        %863 = vmatpush1.msra.mxu0 %v836
        %864 = vmatprep.subr.mxu0 0.0
        %865 = vmatpush1.msra.mxu0 %v837
        %866 = vmatprep.subr.mxu0 0.0
        %867 = vmatpush1.msra.mxu0 %v838
        %868 = vmatprep.subr.mxu0 0.0
        %869 = vmatpush1.msra.mxu0 %v839
        %870 = vmatprep.subr.mxu0 0.0
        %871 = vmatpush1.msra.mxu0 %v840
        %872 = vmatprep.subr.mxu0 0.0
        %873 = vmatpush1.msra.mxu0 %v841
        %874 = vmatprep.subr.mxu0 0.0
        %875 = vmatpush1.msra.mxu0 0.0
        %876 = vmatprep.subr.mxu0 0.0
        %877 = vmatpush1.msra.mxu0 0.0
        %878 = vmatprep.subr.mxu0 0.0
        %879 = vmatpush1.msra.mxu0 0.0
        %880 = vmatprep.subr.mxu0 0.0
        %881 = vmatpush1.msra.mxu0 0.0
        %882 = vmatprep.subr.mxu0 0.0
        %883 = vmatpush1.msra.mxu0 0.0
        %884 = vmatprep.subr.mxu0 0.0
        %885 = vmatpush1.msra.mxu0 0.0
        %886 = vmatprep.subr.mxu0 0.0
        %887 = vmatpush1.msra.mxu0 0.0
        %888 = vmatprep.subr.mxu0 0.0
        %889 = vmatpush1.msra.mxu0 0.0
        %890 = vmatprep.subr.mxu0 0.0
        %891 = vmatpush1.msra.mxu0 0.0
        %892 = vmatprep.subr.mxu0 0.0
        %893 = vmatpush1.msra.mxu0 0.0
        %894 = vmatprep.subr.mxu0 0.0
        %895 = vmatpush1.msra.mxu0 0.0
        %896 = vmatprep.subr.mxu0 0.0
        %897 = vmatpush1.msra.mxu0 0.0
        %898 = vmatprep.subr.mxu0 0.0
        %899 = vmatpush1.msra.mxu0 0.0
        %900 = vmatprep.subr.mxu0 0.0
        %901 = vmatpush1.msra.mxu0 0.0
        %902 = vmatprep.subr.mxu0 0.0
        %903 = vmatpush1.msra.mxu0 0.0
        %904 = vmatprep.subr.mxu0 0.0
        %905 = vmatpush1.msra.mxu0 0.0
        %906 = vmatprep.mubr.f32.mxu0 0.0
        %907 = vmatmul.mubr.f32.gmra.mrb[0].mxu0 %v625
        %v908 = vpop.f32.mrb[0].mxu0
        %v909 = vadd.f32 0.0, %v908
        %v910 = vpop.f32.mrb[0].mxu0
        %911 = vdwg.mxu0
        %912 = vmatprep.subr.mxu0 0.0
        %913 = vmatpush1.msra.mxu0 %v810
        %914 = vmatprep.subr.mxu0 0.0
        %915 = vmatpush1.msra.mxu0 %v811
        %916 = vmatprep.subr.mxu0 0.0
        %917 = vmatpush1.msra.mxu0 %v812
        %918 = vmatprep.subr.mxu0 0.0
        %919 = vmatpush1.msra.mxu0 %v813
        %920 = vmatprep.subr.mxu0 0.0
        %921 = vmatpush1.msra.mxu0 %v814
        %922 = vmatprep.subr.mxu0 0.0
        %923 = vmatpush1.msra.mxu0 %v815
        %924 = vmatprep.subr.mxu0 0.0
        %925 = vmatpush1.msra.mxu0 %v816
        %926 = vmatprep.subr.mxu0 0.0
        %927 = vmatpush1.msra.mxu0 %v817
        %928 = vmatprep.subr.mxu0 0.0
        %929 = vmatpush1.msra.mxu0 %v818
        %930 = vmatprep.subr.mxu0 0.0
        %931 = vmatpush1.msra.mxu0 %v819
        %932 = vmatprep.subr.mxu0 0.0
        %933 = vmatpush1.msra.mxu0 %v820
        %934 = vmatprep.subr.mxu0 0.0
        %935 = vmatpush1.msra.mxu0 %v821
        %936 = vmatprep.subr.mxu0 0.0
        %937 = vmatpush1.msra.mxu0 %v822
        %938 = vmatprep.subr.mxu0 0.0
        %939 = vmatpush1.msra.mxu0 %v823
        %940 = vmatprep.subr.mxu0 0.0
        %941 = vmatpush1.msra.mxu0 %v824
        %942 = vmatprep.subr.mxu0 0.0
        %943 = vmatpush1.msra.mxu0 %v825
        %944 = vmatprep.subr.mxu0 0.0
        %945 = vmatpush1.msra.mxu0 0.0
        %946 = vmatprep.subr.mxu0 0.0
        %947 = vmatpush1.msra.mxu0 0.0
        %948 = vmatprep.subr.mxu0 0.0
        %949 = vmatpush1.msra.mxu0 0.0
        %950 = vmatprep.subr.mxu0 0.0
        %951 = vmatpush1.msra.mxu0 0.0
        %952 = vmatprep.subr.mxu0 0.0
        %953 = vmatpush1.msra.mxu0 0.0
        %954 = vmatprep.subr.mxu0 0.0
        %955 = vmatpush1.msra.mxu0 0.0
        %956 = vmatprep.subr.mxu0 0.0
        %957 = vmatpush1.msra.mxu0 0.0
        %958 = vmatprep.subr.mxu0 0.0
        %959 = vmatpush1.msra.mxu0 0.0
        %960 = vmatprep.subr.mxu0 0.0
        %961 = vmatpush1.msra.mxu0 0.0
        %962 = vmatprep.subr.mxu0 0.0
        %963 = vmatpush1.msra.mxu0 0.0
        %964 = vmatprep.subr.mxu0 0.0
        %965 = vmatpush1.msra.mxu0 0.0
        %966 = vmatprep.subr.mxu0 0.0
        %967 = vmatpush1.msra.mxu0 0.0
        %968 = vmatprep.subr.mxu0 0.0
        %969 = vmatpush1.msra.mxu0 0.0
        %970 = vmatprep.subr.mxu0 0.0
        %971 = vmatpush1.msra.mxu0 0.0
        %972 = vmatprep.subr.mxu0 0.0
        %973 = vmatpush1.msra.mxu0 0.0
        %974 = vmatprep.subr.mxu0 0.0
        %975 = vmatpush1.msra.mxu0 0.0
        %976 = vmatprep.mubr.f32.mxu0 0.0
        %977 = vmatmul.mubr.f32.gmra.mrb[0].mxu0 %v521
        %v978 = vpop.f32.mrb[0].mxu0
        %v979 = vadd.f32 %v909, %v978
        %v980 = vpop.f32.mrb[0].mxu0
        %981 = vdwg.mxu0
        %v982 = vld [vmem:[%s7] sm:$0x1]
        %v984 = vlaneseq
        %v985 = vshrl.u32 %v984, 7
        %v986 = vsub.s32 0, %v985
        %v987 = vrot.slane %v982, %v986
        %v989 = vadd.f32 %v979, %v987
        %vm990 = vcmask 130048
        %991 = vst.msk [vmem:[%s330] sm:$0xff] %vm990, %v989
        %p992 = scmp.lt.s32.totalorder %s24, 1
        %s993 = scalar_select %p992, %s24, 1
        %s994 = smul.addr %s993, 8
        %s995 = scalar_lea.vmem %s8, %s994
        %s996 = sand.u32 %s231, 1
        %s997 = scalar_lea.sflag [#allocation3], %s996
        %s998 = sand.u32 %s231, 1
        %s999 = smul.addr %s998, 8
        %s1000 = scalar_lea.vmem [#allocation2], %s999
        // Predicated region
        $region53: #{tpu_custom_call.1} parent=51 // pred_check
          %p1001 = pneg %p215
        $region54: #{tpu_custom_call.1} parent=51 // pred_check_branch
          %1003 = sbr.rel (%p1001) target = $region56
        $region55: #{tpu_custom_call.1} parent=51 // pred_region
          _
        $region56: #{tpu_custom_call.1} parent=51 // pred_fallthru
          _
        // Predicated region
        $region57: #{tpu_custom_call.1} parent=51 // pred_check
          %p1004 = pneg %p241
        $region58: #{tpu_custom_call.1} parent=51 // pred_check_branch
          %1006 = sbr.rel (%p1004) target = $region60
        $region59: #{tpu_custom_call.1} parent=51 // pred_region
          %s1008 = ssub.s32 128, 128
          %1009 = vsyncadd %s997, %s1008
          %s1010 = smul.addr %s24, 128
          %s1011 = scalar_lea.hbm %s9, %s1010
          %s1013 = sshll.u32 %s1000, 4
          %s1014 = int_to_ptr.vmem [resolvable:$true] %s1013
          %1016 = dma.vmem_to_hbm [thread:$0]  %s1014, 128, %s1011, %s997
        $region60: #{tpu_custom_call.1} parent=51 // pred_fallthru
          _
      $region52: #{tpu_custom_call.1} parent=5 // pred_fallthru
        _
      %p1017 = scmp.le.s32.totalorder 2, %s19
      // Predicated region
      $region61: #{tpu_custom_call.1} parent=5 // pred_check
        %p1018 = pneg %p1017
      $region62: #{tpu_custom_call.1} parent=5 // pred_check_branch
        %1020 = sbr.rel (%p1018) target = $region64
      $region63: #{tpu_custom_call.1} parent=5 // pred_region
        %s1021 = ssub.s32 %s19, 2
        // Predicated region
        $region65: #{tpu_custom_call.1} parent=63 // pred_check
          %p1022 = pneg %p221
        $region66: #{tpu_custom_call.1} parent=63 // pred_check_branch
          %1024 = sbr.rel (%p1022) target = $region68
        $region67: #{tpu_custom_call.1} parent=63 // pred_region
          %p1025 = scmp.lt.s32.totalorder %s25, 1
          %s1026 = scalar_select %p1025, %s25, 1
          %s1027 = smul.addr %s1026, 8
          %s1028 = scalar_lea.vmem %s8, %s1027
        $region68: #{tpu_custom_call.1} parent=63 // pred_fallthru
          _
        // Predicated region
        $region69: #{tpu_custom_call.1} parent=63 // pred_check
          %p1029 = pneg %p247
        $region70: #{tpu_custom_call.1} parent=63 // pred_check_branch
          %1031 = sbr.rel (%p1029) target = $region72
        $region71: #{tpu_custom_call.1} parent=63 // pred_region
          %s1032 = sand.u32 %s232, 1
          %s1033 = scalar_lea.sflag [#allocation3], %s1032
          %s1034 = sand.u32 %s232, 1
          %s1035 = smul.addr %s1034, 8
          %s1036 = scalar_lea.vmem [#allocation2], %s1035
          %1037 = dma.done %s1033, 128
        $region72: #{tpu_custom_call.1} parent=63 // pred_fallthru
          _
      $region64: #{tpu_custom_call.1} parent=5 // pred_fallthru
        _
    $region6: #{tpu_custom_call.1} parent=1 // loop_footer
      %s23 = sadd.s32 1, %s19
    $region7: #{tpu_custom_call.1} parent=1 // loop_footer_branch
      %18 = sbr.rel target = $region3
    $region8: #{tpu_custom_call.1} parent=1 // loop_exit
      _
    %1038 = vsyncpa [#allocation3], 1
    %s1039 = scalar_lea.sflag [#allocation3], 1
    %1040 = vsyncpa %s1039, 1

</llo_original>
